<compile_context>
chip_gen: v6e
topology: v6e:2x2x1
jax: 0.10.0
libtpu: 0.0.40
codegen_flags: <defaults>
</compile_context>

<pallas_src>
import jax
import jax.numpy as jnp
from jax.experimental import pallas as pl
from jax.experimental.pallas import tpu as pltpu


def _make_mc_replicate_kernel(k: int):
    def kernel(x_ref, o_ref):
        # x_ref: (B_TILE, F_TILE)        -- input batch-row tile
        # o_ref: (B_TILE * k, F_TILE)    -- k consecutive MC copies of each input row
        # Output row r holds input row r // k: repeat each row k times along sublanes.
        # When k*dtype packing aligns with the (8,128) tiling this is a pure retile;
        # the kernel is HBM-write-bound either way, so any relayout hides under DMA.
        o_ref[...] = jnp.repeat(x_ref[...], k, axis=0)

    return kernel


def _vmem_capacity_bytes() -> int:
    """Per-core VMEM capacity, with a conservative (v7x-safe) fallback."""
    try:
        cap = int(pltpu.get_tpu_info().vmem_capacity_bytes)
        if cap > 0:
            return cap
    except Exception:
        pass
    return 64 * 1024 * 1024


def _choose_tiles(B: int, F: int, k: int, itemsize: int, budget_bytes: int):
    """Largest (b_tile, f_tile) whose double-buffered VMEM footprint
    2 * b_tile * (1 + k) * f_tile * itemsize stays within budget_bytes."""
    max_elems = max(budget_bytes // (2 * (1 + k) * itemsize), 8 * 128)

    if B * F <= max_elems:
        return B, F  # whole problem fits in a single block

    if F <= max_elems:
        f_tile = F  # keep the full lane-dense feature axis per block
    else:
        # 128-aligned cap; the cdiv grid + edge-block masking handles any remainder
        # (fixes the old "return full F regardless of budget" fallback).
        f_tile = (max_elems // 128) * 128

    b_tile = min(B, max(max_elems // f_tile, 1))
    if 8 <= b_tile < B:
        b_tile = (b_tile // 8) * 8  # sublane-aligned input blocks when not full-extent
    return b_tile, f_tile


def bayesian_module_forward(x, k: int):
    """Pallas implementation of BayesianModule.forward with identity mc_forward_impl.

    Args:
      x: jnp array of shape [B, C, H, W] (any trailing shape works).
      k: number of MC samples.

    Returns:
      Array of shape [B, k, *x.shape[1:]] with out[b, j] == x[b].
    """
    B = x.shape[0]
    rest = tuple(x.shape[1:])
    F = 1
    for d in rest:
        F *= d

    x2d = x.reshape(B, F)  # metadata-only; feature axis is lane-dense
    itemsize = jnp.dtype(x.dtype).itemsize

    cap = _vmem_capacity_bytes()
    budget_bytes = (cap * 3) // 8  # double-buffered tile budget: ~24 MiB v7x, ~48 MiB v5e/v6e
    vmem_limit = (cap * 3) // 4    # scoped VMEM limit: ~48 MiB v7x, ~96 MiB v5e/v6e

    b_tile, f_tile = _choose_tiles(B, F, k, itemsize, budget_bytes)
    n_b = pl.cdiv(B, b_tile)
    n_f = pl.cdiv(F, f_tile)

    # Order the grid so the larger-extent axis leads (helps cross-TC sharding on v7x
    # when F fits a single tile, which is the common CNN case).
    if n_b >= n_f:
        grid = (n_b, n_f)
        in_spec = pl.BlockSpec((b_tile, f_tile), lambda b, f: (b, f))
        out_spec = pl.BlockSpec((b_tile * k, f_tile), lambda b, f: (b, f))
    else:
        grid = (n_f, n_b)
        in_spec = pl.BlockSpec((b_tile, f_tile), lambda f, b: (b, f))
        out_spec = pl.BlockSpec((b_tile * k, f_tile), lambda f, b: (b, f))

    out2d = pl.pallas_call(
        _make_mc_replicate_kernel(k),
        out_shape=jax.ShapeDtypeStruct((B * k, F), x.dtype),
        grid_spec=pltpu.PrefetchScalarGridSpec(
            num_scalar_prefetch=0,
            grid=grid,
            in_specs=[in_spec],
            out_specs=out_spec,
        ),
        compiler_params=pltpu.CompilerParams(
            dimension_semantics=("parallel", "parallel"),
            vmem_limit_bytes=int(vmem_limit),
        ),
        cost_estimate=pl.CostEstimate(
            flops=0,
            transcendentals=0,
            bytes_accessed=(1 + k) * B * F * itemsize,
        ),
    )(x2d)

    # (B*k, F) row-major == (B, k, F) row-major; reshape is metadata-only.
    return out2d.reshape((B, k) + rest)


if __name__ == "__main__":
    key = jax.random.PRNGKey(0)
    B, C, H, W = 2, 4, 16, 16
    k = 8
    x = jax.random.normal(key, (B, C, H, W), dtype=jnp.float32)

    y = bayesian_module_forward(x, k)
    y = jax.block_until_ready(y)

    # Verify semantics: out[b, j] == x[b] for all j.
    assert y.shape == (B, k, C, H, W), y.shape
    expected = jnp.broadcast_to(x[:, None], (B, k, C, H, W))
    assert jnp.array_equal(y, expected), "MC replication mismatch"

    print("KERNEL_OK")
</pallas_src>

<mosaic_0001>
module attributes {stable_mosaic.version = 11 : i64} {
  func.func @kernel(%arg0: i32, %arg1: i32, %arg2: memref<2x1024xf32, #tpu.memory_space<vmem>>, %arg3: memref<16x1024xf32, #tpu.memory_space<vmem>>) attributes {dimension_semantics = [#tpu.dimension_semantics<parallel>, #tpu.dimension_semantics<parallel>], iteration_bounds = array<i64: 1, 1>, scalar_prefetch = 0 : i64, scratch_operands = 0 : i64, tpu.core_type = #tpu.core_type<tc>, window_params = [{transform_indices = @transform_0, window_bounds = array<i64: 2, 1024>}, {transform_indices = @transform_1, window_bounds = array<i64: 16, 1024>}]} {
    %c0 = arith.constant 0 : index
    %c0_0 = arith.constant 0 : index
    %0 = vector.load %arg2[%c0, %c0_0] : memref<2x1024xf32, #tpu.memory_space<vmem>>, vector<2x1024xf32>
    %1 = vector.shape_cast %0 : vector<2x1024xf32> to vector<2x1x1024xf32>
    %2 = vector.broadcast %1 : vector<2x1x1024xf32> to vector<2x8x1024xf32>
    %3 = vector.shape_cast %2 : vector<2x8x1024xf32> to vector<16x1024xf32>
    %c0_1 = arith.constant 0 : index
    %c0_2 = arith.constant 0 : index
    %4 = vector.load %arg3[%c0_1, %c0_2] : memref<16x1024xf32, #tpu.memory_space<vmem>>, vector<16x1024xf32>
    tpu.vector_store %arg3[%c0_1, %c0_2], %3 {strides = array<i32>} : memref<16x1024xf32, #tpu.memory_space<vmem>>, vector<16x1024xf32>,
    return
  }
  func.func @transform_0(%arg0: i32, %arg1: i32) -> (i32, i32) {
    %c0_i32 = arith.constant 0 : i32
    return %arg0, %arg1 : i32, i32
  }
  func.func @transform_1(%arg0: i32, %arg1: i32) -> (i32, i32) {
    %c0_i32 = arith.constant 0 : i32
    return %arg0, %arg1 : i32, i32
  }
}

</mosaic_0001>

<llo_original>
// kernel: tpu_custom_call.1
$region0: #{tpu_custom_call.1}
  #allocation0 [shape = 'u32[]', space=smem, size = 0x4, offset = 0x4, fixed_abs, tag = 'smem constant byte address 0x4 - core index']
  #allocation1 [shape = 'u32[144,128]{1,0:T(1,128)}', space=vmem, size = 0x12000, scoped, tag = 'internal scratch']
  %s0 = inlined_call_operand.hbm [shape: f32[2,1024], index: 0, kind: input, shape index: {}]
  %s1 = inlined_call_operand.hbm [shape: f32[16,1024], index: 1, kind: output, shape index: {}]
  %s2 = sld [smem:[#allocation0]]
  $region18: #{tpu_custom_call.1} parent=0
    _
  %s4 = ssub.s32 1, %s2
  %s5 = scalar_select 0, %s4, %s2
  $region1: #{tpu_custom_call.1} parent=0
    #allocation2 [shape = 'u8[8192]{0}', space=vmem, size = 0x2000, scoped, tag = 'input window, operand 0, single buffered']
    #allocation3 [shape = 's32[1]{0}', space=sflag, size = 0x4, scoped, tag = 'scoped memory for tpu_custom_call.1']
    #allocation4 [shape = 's32[1]{0}', space=sflag, size = 0x4, scoped, tag = 'scoped memory for tpu_custom_call.1']
    #allocation5 [shape = 'u8[65536]{0}', space=vmem, size = 0x10000, scoped, tag = 'output window, operand 0, single buffered']
    %6 = vsyncpa [#allocation3], 0
    %7 = vsyncpa [#allocation4], 0
    // Predicated region
    $region2: #{tpu_custom_call.1} parent=1 // pred_check
      _
    $region3: #{tpu_custom_call.1} parent=1 // pred_check_branch
      %9 = sbr.rel (0) target = $region5
    $region4: #{tpu_custom_call.1} parent=1 // pred_region
      %s11 = ssub.s32 256, 256
      %12 = vsyncadd [#allocation3], %s11
      %s14 = sshll.u32 [#allocation2], 4
      %s15 = int_to_ptr.vmem [resolvable:$true] %s14
      %17 = dma.hbm_to_vmem [thread:$0]  %s0, 256, %s15, [#allocation3]
    $region5: #{tpu_custom_call.1} parent=1 // pred_fallthru
      _
    // Predicated region
    $region6: #{tpu_custom_call.1} parent=1 // pred_check
      _
    $region7: #{tpu_custom_call.1} parent=1 // pred_check_branch
      %19 = sbr.rel (0) target = $region9
    $region8: #{tpu_custom_call.1} parent=1 // pred_region
      %20 = dma.done [#allocation3], 256
    $region9: #{tpu_custom_call.1} parent=1 // pred_fallthru
      _
    %v21 = vld [vmem:[#allocation2] sm:$0xff]
    %v22 = vld [vmem:[#allocation2 + $0x8] sm:$0xff]
    %v26 = vunpack.c.l.s4 1966171168
    %v27 = vunpack.c.0.s8 %v26
    %v28 = vlaneseq
    %v29 = vshrl.u32 %v28, 7
    %v30 = vsub.s32 %v27, %v29
    %v31 = vrot.slane %v21, %v30
    %v33 = vunpack.c.l.s4 1966171168
    %v34 = vunpack.c.0.s8 %v33
    %v35 = vlaneseq
    %v36 = vshrl.u32 %v35, 7
    %v37 = vsub.s32 %v34, %v36
    %v38 = vrot.slane %v22, %v37
    %v39 = vcombine.low %v31, %v38
    %v40 = vcombine.high %v31, %v38
    %v41 = vlaneseq
    %v42 = vshrl.u32 %v41, 7
    %v43 = vsub.s32 0, %v42
    %v44 = vrot.slane %v39, %v43
    %v45 = vlaneseq
    %v46 = vshrl.u32 %v45, 7
    %v47 = vsub.s32 1, %v46
    %v48 = vrot.slane %v39, %v47
    %v49 = vlaneseq
    %v50 = vshrl.u32 %v49, 7
    %v51 = vsub.s32 2, %v50
    %v52 = vrot.slane %v39, %v51
    %v53 = vlaneseq
    %v54 = vshrl.u32 %v53, 7
    %v55 = vsub.s32 3, %v54
    %v56 = vrot.slane %v39, %v55
    %v57 = vlaneseq
    %v58 = vshrl.u32 %v57, 7
    %v59 = vsub.s32 4, %v58
    %v60 = vrot.slane %v39, %v59
    %v61 = vlaneseq
    %v62 = vshrl.u32 %v61, 7
    %v63 = vsub.s32 5, %v62
    %v64 = vrot.slane %v39, %v63
    %v65 = vlaneseq
    %v66 = vshrl.u32 %v65, 7
    %v67 = vsub.s32 6, %v66
    %v68 = vrot.slane %v39, %v67
    %v69 = vlaneseq
    %v70 = vshrl.u32 %v69, 7
    %v71 = vsub.s32 7, %v70
    %v72 = vrot.slane %v39, %v71
    %v73 = vlaneseq
    %v74 = vshrl.u32 %v73, 7
    %v75 = vsub.s32 0, %v74
    %v76 = vrot.slane %v40, %v75
    %v77 = vlaneseq
    %v78 = vshrl.u32 %v77, 7
    %v79 = vsub.s32 1, %v78
    %v80 = vrot.slane %v40, %v79
    %v81 = vlaneseq
    %v82 = vshrl.u32 %v81, 7
    %v83 = vsub.s32 2, %v82
    %v84 = vrot.slane %v40, %v83
    %v85 = vlaneseq
    %v86 = vshrl.u32 %v85, 7
    %v87 = vsub.s32 3, %v86
    %v88 = vrot.slane %v40, %v87
    %v89 = vlaneseq
    %v90 = vshrl.u32 %v89, 7
    %v91 = vsub.s32 4, %v90
    %v92 = vrot.slane %v40, %v91
    %v93 = vlaneseq
    %v94 = vshrl.u32 %v93, 7
    %v95 = vsub.s32 5, %v94
    %v96 = vrot.slane %v40, %v95
    %v97 = vlaneseq
    %v98 = vshrl.u32 %v97, 7
    %v99 = vsub.s32 6, %v98
    %v100 = vrot.slane %v40, %v99
    %v101 = vlaneseq
    %v102 = vshrl.u32 %v101, 7
    %v103 = vsub.s32 7, %v102
    %v104 = vrot.slane %v40, %v103
    %121 = vst [vmem:[#allocation5] sm:$0xff] %v44
    %122 = vst [vmem:[#allocation5 + $0x8] sm:$0xff] %v48
    %123 = vst [vmem:[#allocation5 + $0x10] sm:$0xff] %v52
    %124 = vst [vmem:[#allocation5 + $0x18] sm:$0xff] %v56
    %125 = vst [vmem:[#allocation5 + $0x20] sm:$0xff] %v60
    %126 = vst [vmem:[#allocation5 + $0x28] sm:$0xff] %v64
    %127 = vst [vmem:[#allocation5 + $0x30] sm:$0xff] %v68
    %128 = vst [vmem:[#allocation5 + $0x38] sm:$0xff] %v72
    %129 = vst [vmem:[#allocation5 + $0x40] sm:$0xff] %v76
    %130 = vst [vmem:[#allocation5 + $0x48] sm:$0xff] %v80
    %131 = vst [vmem:[#allocation5 + $0x50] sm:$0xff] %v84
    %132 = vst [vmem:[#allocation5 + $0x58] sm:$0xff] %v88
    %133 = vst [vmem:[#allocation5 + $0x60] sm:$0xff] %v92
    %134 = vst [vmem:[#allocation5 + $0x68] sm:$0xff] %v96
    %135 = vst [vmem:[#allocation5 + $0x70] sm:$0xff] %v100
    %136 = vst [vmem:[#allocation5 + $0x78] sm:$0xff] %v104
    // Predicated region
    $region10: #{tpu_custom_call.1} parent=1 // pred_check
      _
    $region11: #{tpu_custom_call.1} parent=1 // pred_check_branch
      %138 = sbr.rel (0) target = $region13
    $region12: #{tpu_custom_call.1} parent=1 // pred_region
      %s140 = ssub.s32 2048, 2048
      %141 = vsyncadd [#allocation4], %s140
      %s142 = sshll.u32 [#allocation5], 4
      %s143 = int_to_ptr.vmem [resolvable:$true] %s142
      %148 = dma.vmem_to_hbm [thread:$0]  %s143, 2048, %s1, [#allocation4], 1024, 1024, 64
    $region13: #{tpu_custom_call.1} parent=1 // pred_fallthru
      _
    // Predicated region
    $region14: #{tpu_custom_call.1} parent=1 // pred_check
      _
    $region15: #{tpu_custom_call.1} parent=1 // pred_check_branch
      %150 = sbr.rel (0) target = $region17
    $region16: #{tpu_custom_call.1} parent=1 // pred_region
      %151 = dma.done [#allocation4], 2048
    $region17: #{tpu_custom_call.1} parent=1 // pred_fallthru
      _
    %152 = vsyncpa [#allocation3], 1
    %153 = vsyncpa [#allocation4], 1

</llo_original>
